<compile_context>
chip_gen: v7x
topology: tpu7x:2x2x1
jax: 0.10.0
libtpu: 0.0.40
codegen_flags: <defaults>
</compile_context>

<pallas_src>
import functools

import jax
import jax.numpy as jnp
from jax.experimental import pallas as pl
from jax.experimental.pallas import tpu as pltpu


_NCORES = 2  # v7x has 2 TensorCores/chip; the extra outer step is harmless on v5e/v6e.


def _vmem_budget_bytes():
    """(tile footprint budget, explicit scoped-VMEM request), derived per chip."""
    cap = 64 << 20  # conservative fallback = v7x per-core VMEM
    try:
        info = pltpu.get_tpu_info()
        cap = int(getattr(info, "vmem_capacity_bytes", cap))
    except Exception:
        pass
    budget = min((cap * 3) // 8, 48 << 20)        # what we aim the tile footprint at
    limit = min(cap // 2, budget + (16 << 20))    # explicit scoped-VMEM request w/ headroom
    return budget, limit


def _pick_tile_rows(c, in_itemsize, budget_bytes):
    """Largest 8-aligned row-tile whose full VMEM footprint fits the budget."""
    bytes_per_row = (
        2 * c * in_itemsize      # double-buffered logits input block
        + 2 * 128 * 4            # double-buffered (T,1) int32 labels (lane padded to 128)
        + 4 * c * 4              # live (T,C) f32 temporaries (cast x, exp, one-hot select, ...)
        + 6 * 128 * 4            # live (T,1) f32 column temporaries (lane padded)
    )
    rows = budget_bytes // max(bytes_per_row, 1)
    return max(8, (rows // 8) * 8)


def _per_row_focal(x, lab, *, alpha, gamma):
    """x: (T, C) f32 logits tile, lab: (T, 1) int32 labels -> (T, 1) f32 per-sample loss."""
    t, c = x.shape

    # Row-wise softmax pieces; the full `probs` matrix is never materialized.
    m = jnp.max(x, axis=1, keepdims=True)                        # (T, 1)
    e = jnp.exp(x - m)                                           # (T, C) -- only big temp
    denom = jnp.sum(e, axis=1, keepdims=True)                    # (T, 1)

    # one_hot from a hoisted (1, C) class-id row vs. the (T, 1) labels column.
    cls_row = jax.lax.broadcasted_iota(jnp.int32, (1, c), 1)     # (1, C)
    one_hot = cls_row == lab                                     # (T, C) bool
    # Keep the select (not a 0/1 multiply): garbage tail rows may carry NaN through exp.
    e_true = jnp.sum(jnp.where(one_hot, e, 0.0), axis=1, keepdims=True)  # (T, 1)

    p_t = e_true / denom

    one_minus = 1.0 - p_t
    g = float(gamma)
    if g == int(g) and 0 <= int(g) <= 8:
        # Repeated VALU multiplies; keeps the single EUP free for exp/log.
        mod = jnp.ones_like(one_minus)
        for _ in range(int(g)):
            mod = mod * one_minus
    else:
        mod = jnp.power(one_minus, jnp.float32(g))

    ce = -jnp.log(p_t + 1e-8)                                    # reference epsilon

    # Reference's alpha_t = sum_c where(one_hot, alpha, 1-alpha) is data independent.
    # TODO(synk): this faithfully matches the PyTorch module as written; standard focal
    # loss would use alpha for the true class only.
    alpha_t = jnp.float32(alpha + (c - 1) * (1.0 - alpha))

    return alpha_t * mod * ce                                    # (T, 1)


def _focal_reduce_kernel(logits_ref, labels_ref, out_ref, *, alpha, gamma,
                         n_total, tiles_per_core):
    ci = pl.program_id(0)        # core-split axis ("parallel")
    ti = pl.program_id(1)        # row-tile axis  ("arbitrary", reduction)
    tile_n = logits_ref.shape[0]

    x = logits_ref[...].astype(jnp.float32)
    lab = labels_ref[...].astype(jnp.int32)
    focal = _per_row_focal(x, lab, alpha=alpha, gamma=gamma)

    # Mask rows past N (tail of last real tile + fully-padded tiles of the core split).
    tile_idx = ci * tiles_per_core + ti
    row_ids = tile_idx * tile_n + jax.lax.broadcasted_iota(jnp.int32, (tile_n, 1), 0)
    focal = jnp.where(row_ids < n_total, focal, 0.0)             # select, NOT multiply

    @pl.when(ti == 0)
    def _():
        out_ref[...] = jnp.zeros_like(out_ref)

    out_ref[...] += jnp.sum(focal)   # per-core output-resident accumulator block


def _focal_none_kernel(logits_ref, labels_ref, out_ref, *, alpha, gamma):
    x = logits_ref[...].astype(jnp.float32)
    lab = labels_ref[...].astype(jnp.int32)
    # Rows past N in the final block are dropped by Pallas on writeback.
    out_ref[...] = _per_row_focal(x, lab, alpha=alpha, gamma=gamma)


def focal_loss_single_label(logits, labels, *, alpha=0.25, gamma=2.0,
                            reduction='mean', tile_n=None):
    """Pallas TPU focal loss. logits: (N, C) f32/bf16, labels: (N,) int."""
    n, c = logits.shape
    labels2d = labels.reshape(n, 1).astype(jnp.int32)
    # TODO(synk): labels could be shipped lane-dense as (num_tiles, tile_n) blocks
    # (in-kernel XLU relayout) to drop the 128x lane padding of the (T,1) block.

    budget, vmem_limit = _vmem_budget_bytes()
    if tile_n is None:
        tile_n = _pick_tile_rows(c, jnp.dtype(logits.dtype).itemsize, budget)
    if tile_n >= n:
        tile_n = n                           # single full-extent block (always legal)
    else:
        tile_n = max(8, (tile_n // 8) * 8)   # keep block rows 8-aligned

    num_tiles = pl.cdiv(n, tile_n)

    if reduction in ('mean', 'sum'):
        tiles_per_core = pl.cdiv(num_tiles, _NCORES)

        def in_index(ci, ti):
            # Clamp padded tiles of the core split onto the last real tile; their rows
            # are masked out inside the kernel via the (unclamped) logical tile index.
            return (jnp.minimum(ci * tiles_per_core + ti, num_tiles - 1), 0)

        kernel = functools.partial(_focal_reduce_kernel, alpha=alpha, gamma=gamma,
                                   n_total=n, tiles_per_core=tiles_per_core)
        partials = pl.pallas_call(
            kernel,
            out_shape=jax.ShapeDtypeStruct((_NCORES, 8, 128), jnp.float32),
            grid=(_NCORES, tiles_per_core),
            in_specs=[
                pl.BlockSpec((tile_n, c), in_index),   # logits tile; class axis on lanes
                pl.BlockSpec((tile_n, 1), in_index),   # labels tile
            ],
            out_specs=pl.BlockSpec((1, 8, 128), lambda ci, ti: (ci, 0, 0)),
            compiler_params=pltpu.CompilerParams(
                dimension_semantics=("parallel", "arbitrary"),
                vmem_limit_bytes=vmem_limit),
        )(logits, labels2d)

        total = jnp.sum(partials[:, 0, 0])           # sum the per-core partials
        if reduction == 'mean':
            return total / jnp.float32(n)
        return total

    # reduction == 'none'
    # TODO(synk): per-sample (N,1) output keeps 1-of-128-lane masked stores; a lane-dense
    # (num_tiles, tile_n) output (in-kernel (T,1)->(1,T) relayout on the idle XLU) would
    # cut store-slot pressure if this path becomes hot.
    # TODO(synk): for C << 128 a samples-on-lanes layout would restore lane utilization,
    # but only if the producer can emit transposed logits without an extra HBM pass.
    kernel = functools.partial(_focal_none_kernel, alpha=alpha, gamma=gamma)
    result = pl.pallas_call(
        kernel,
        out_shape=jax.ShapeDtypeStruct((n, 1), jnp.float32),
        grid=(num_tiles,),
        in_specs=[
            pl.BlockSpec((tile_n, c), lambda i: (i, 0)),
            pl.BlockSpec((tile_n, 1), lambda i: (i, 0)),
        ],
        out_specs=pl.BlockSpec((tile_n, 1), lambda i: (i, 0)),
        compiler_params=pltpu.CompilerParams(
            dimension_semantics=("parallel",),
            vmem_limit_bytes=vmem_limit),
    )(logits, labels2d)
    return result[:, 0]


def _reference(logits, labels, alpha=0.25, gamma=2.0, reduction='mean'):
    # Pure-JAX mirror of the PyTorch forward, for validation.
    logits = logits.astype(jnp.float32)
    probs = jax.nn.softmax(logits, axis=1)
    one_hot = jax.nn.one_hot(labels, logits.shape[1], dtype=jnp.float32)
    p_t = jnp.sum(probs * one_hot, axis=1)
    mod = (1.0 - p_t) ** gamma
    alpha_t = jnp.sum(jnp.where(one_hot == 1, alpha, 1 - alpha), axis=1)
    fl = alpha_t * mod * (-jnp.log(p_t + 1e-8))
    if reduction == 'mean':
        return fl.mean()
    if reduction == 'sum':
        return fl.sum()
    return fl


if __name__ == "__main__":
    key = jax.random.PRNGKey(0)
    k_logits, k_labels = jax.random.split(key)

    N, C = 20, 16            # N not a multiple of the tile -> exercises tail masking
    ALPHA, GAMMA = 0.25, 2.0
    TILE_N = 8               # small tile so the test runs a real multi-step, core-split grid

    logits = jax.random.normal(k_logits, (N, C), dtype=jnp.float32)
    labels = jax.random.randint(k_labels, (N,), 0, C, dtype=jnp.int32)

    # Explicit small tile: multi-tile grid, clamped/masked padded tiles, all reductions.
    for red in ('mean', 'sum', 'none'):
        out = focal_loss_single_label(logits, labels, alpha=ALPHA, gamma=GAMMA,
                                      reduction=red, tile_n=TILE_N)
        out = jax.block_until_ready(out)
        ref = _reference(logits, labels, alpha=ALPHA, gamma=GAMMA, reduction=red)
        assert jnp.allclose(out, ref, rtol=1e-5, atol=1e-5), (red, out, ref)

    # Auto-sized tile: single full-extent block path (tile picker + VMEM budget).
    out = focal_loss_single_label(logits, labels, alpha=ALPHA, gamma=GAMMA,
                                  reduction='mean')
    out = jax.block_until_ready(out)
    ref = _reference(logits, labels, alpha=ALPHA, gamma=GAMMA, reduction='mean')
    assert jnp.allclose(out, ref, rtol=1e-5, atol=1e-5), ('mean-auto', out, ref)

    print("KERNEL_OK")
</pallas_src>

<mosaic_0001>
module attributes {stable_mosaic.version = 11 : i64} {
  func.func @_focal_reduce_kernel(%arg0: i32, %arg1: i32, %arg2: memref<8x16xf32, #tpu.memory_space<vmem>>, %arg3: memref<8x1xi32, #tpu.memory_space<vmem>>, %arg4: memref<1x8x128xf32, #tpu.memory_space<vmem>>) attributes {dimension_semantics = [#tpu.dimension_semantics<parallel>, #tpu.dimension_semantics<arbitrary>], iteration_bounds = array<i64: 2, 2>, scalar_prefetch = 0 : i64, scratch_operands = 0 : i64, tpu.core_type = #tpu.core_type<tc>, window_params = [{transform_indices = @transform_0, window_bounds = array<i64: 8, 16>}, {transform_indices = @transform_1, window_bounds = array<i64: 8, 1>}, {transform_indices = @transform_2, window_bounds = array<i64: 1, 8, 128>}]} {
    %c0 = arith.constant 0 : index
    %c0_0 = arith.constant 0 : index
    %0 = vector.load %arg2[%c0, %c0_0] : memref<8x16xf32, #tpu.memory_space<vmem>>, vector<8x16xf32>
    %c0_1 = arith.constant 0 : index
    %c0_2 = arith.constant 0 : index
    %1 = vector.load %arg3[%c0_1, %c0_2] : memref<8x1xi32, #tpu.memory_space<vmem>>, vector<8x1xi32>
    %cst = arith.constant dense<0xFF800000> : vector<8xf32>
    %2 = vector.multi_reduction <maximumf>, %0, %cst [1] : vector<8x16xf32> to vector<8xf32>
    %3 = vector.shape_cast %2 : vector<8xf32> to vector<8x1xf32>
    %4 = vector.broadcast %3 : vector<8x1xf32> to vector<8x16xf32>
    %5 = arith.subf %0, %4 : vector<8x16xf32>
    %6 = math.exp %5 : vector<8x16xf32>
    %cst_3 = arith.constant dense<0.000000e+00> : vector<8xf32>
    %7 = vector.multi_reduction <add>, %6, %cst_3 [1] : vector<8x16xf32> to vector<8xf32>
    %8 = vector.shape_cast %7 : vector<8xf32> to vector<8x1xf32>
    %9 = tpu.iota {dimensions = array<i32: 1>} : vector<1x16xi32>
    %10 = vector.broadcast %9 : vector<1x16xi32> to vector<8x16xi32>
    %11 = vector.broadcast %1 : vector<8x1xi32> to vector<8x16xi32>
    %12 = arith.cmpi eq, %10, %11 : vector<8x16xi32>
    %cst_4 = arith.constant 0.000000e+00 : f32
    %13 = vector.broadcast %cst_4 : f32 to vector<8x16xf32>
    %14 = arith.select %12, %6, %13 : vector<8x16xi1>, vector<8x16xf32>
    %cst_5 = arith.constant dense<0.000000e+00> : vector<8xf32>
    %15 = vector.multi_reduction <add>, %14, %cst_5 [1] : vector<8x16xf32> to vector<8xf32>
    %16 = vector.shape_cast %15 : vector<8xf32> to vector<8x1xf32>
    %17 = arith.divf %16, %8 : vector<8x1xf32>
    %cst_6 = arith.constant 1.000000e+00 : f32
    %18 = vector.broadcast %cst_6 : f32 to vector<8x1xf32>
    %19 = arith.subf %18, %17 : vector<8x1xf32>
    %cst_7 = arith.constant 1.000000e+00 : f32
    %20 = vector.broadcast %cst_7 : f32 to vector<8x1xf32>
    %21 = arith.mulf %20, %19 : vector<8x1xf32>
    %22 = arith.mulf %21, %19 : vector<8x1xf32>
    %cst_8 = arith.constant 9.99999993E-9 : f32
    %23 = vector.broadcast %cst_8 : f32 to vector<8x1xf32>
    %24 = arith.addf %17, %23 : vector<8x1xf32>
    %25 = math.log %24 : vector<8x1xf32>
    %cst_9 = arith.constant 0.000000e+00 : f32
    %26 = vector.broadcast %cst_9 : f32 to vector<8x1xf32>
    %27 = arith.subf %26, %25 : vector<8x1xf32>
    %cst_10 = arith.constant 1.150000e+01 : f32
    %28 = vector.broadcast %cst_10 : f32 to vector<8x1xf32>
    %29 = arith.mulf %28, %22 : vector<8x1xf32>
    %30 = arith.mulf %29, %27 : vector<8x1xf32>
    %c2_i32 = arith.constant 2 : i32
    %31 = arith.muli %arg0, %c2_i32 : i32
    %32 = arith.addi %31, %arg1 : i32
    %c8_i32 = arith.constant 8 : i32
    %33 = arith.muli %32, %c8_i32 : i32
    %34 = tpu.iota {dimensions = array<i32: 0>} : vector<8x1xi32>
    %35 = vector.broadcast %33 : i32 to vector<8x1xi32>
    %36 = arith.addi %35, %34 : vector<8x1xi32>
    %c20_i32 = arith.constant 20 : i32
    %37 = vector.broadcast %c20_i32 : i32 to vector<8x1xi32>
    %38 = arith.cmpi slt, %36, %37 : vector<8x1xi32>
    %cst_11 = arith.constant 0.000000e+00 : f32
    %39 = vector.broadcast %cst_11 : f32 to vector<8x1xf32>
    %40 = arith.select %38, %30, %39 : vector<8x1xi1>, vector<8x1xf32>
    %c0_i32 = arith.constant 0 : i32
    %41 = arith.cmpi eq, %arg1, %c0_i32 : i32
    %42 = arith.extui %41 : i1 to i32
    %c0_i32_12 = arith.constant 0 : i32
    %43 = arith.cmpi ne, %42, %c0_i32_12 : i32
    scf.if %43 {
      %cst_20 = arith.constant 0.000000e+00 : f32
      %52 = vector.broadcast %cst_20 : f32 to vector<1x8x128xf32>
      %c0_21 = arith.constant 0 : index
      %c0_22 = arith.constant 0 : index
      %c0_23 = arith.constant 0 : index
      %53 = vector.load %arg4[%c0_21, %c0_22, %c0_23] : memref<1x8x128xf32, #tpu.memory_space<vmem>>, vector<1x8x128xf32>
      tpu.vector_store %arg4[%c0_21, %c0_22, %c0_23], %52 {strides = array<i32>} : memref<1x8x128xf32, #tpu.memory_space<vmem>>, vector<1x8x128xf32>,
    } else {
    }
    %c0_13 = arith.constant 0 : index
    %c0_14 = arith.constant 0 : index
    %c0_15 = arith.constant 0 : index
    %44 = vector.load %arg4[%c0_13, %c0_14, %c0_15] : memref<1x8x128xf32, #tpu.memory_space<vmem>>, vector<1x8x128xf32>
    %45 = vector.shape_cast %40 : vector<8x1xf32> to vector<1x8x1xf32>
    %cst_16 = arith.constant dense<0.000000e+00> : vector<1xf32>
    %46 = vector.multi_reduction <add>, %45, %cst_16 [1, 2] : vector<1x8x1xf32> to vector<1xf32>
    %47 = vector.shape_cast %46 : vector<1xf32> to vector<1x1x1xf32>
    %48 = vector.extract %47[0, 0, 0] : f32 from vector<1x1x1xf32>
    %49 = vector.broadcast %48 : f32 to vector<1x8x128xf32>
    %50 = arith.addf %44, %49 : vector<1x8x128xf32>
    %c0_17 = arith.constant 0 : index
    %c0_18 = arith.constant 0 : index
    %c0_19 = arith.constant 0 : index
    %51 = vector.load %arg4[%c0_17, %c0_18, %c0_19] : memref<1x8x128xf32, #tpu.memory_space<vmem>>, vector<1x8x128xf32>
    tpu.vector_store %arg4[%c0_17, %c0_18, %c0_19], %50 {strides = array<i32>} : memref<1x8x128xf32, #tpu.memory_space<vmem>>, vector<1x8x128xf32>,
    return
  }
  func.func @transform_0(%arg0: i32, %arg1: i32) -> (i32, i32) {
    %c2_i32 = arith.constant 2 : i32
    %0 = arith.muli %arg0, %c2_i32 : i32
    %1 = arith.addi %0, %arg1 : i32
    %c2_i32_0 = arith.constant 2 : i32
    %2 = arith.minsi %1, %c2_i32_0 : i32
    %c0_i32 = arith.constant 0 : i32
    %c0_i32_1 = arith.constant 0 : i32
    return %2, %c0_i32 : i32, i32
  }
  func.func @transform_1(%arg0: i32, %arg1: i32) -> (i32, i32) {
    %c2_i32 = arith.constant 2 : i32
    %0 = arith.muli %arg0, %c2_i32 : i32
    %1 = arith.addi %0, %arg1 : i32
    %c2_i32_0 = arith.constant 2 : i32
    %2 = arith.minsi %1, %c2_i32_0 : i32
    %c0_i32 = arith.constant 0 : i32
    %c0_i32_1 = arith.constant 0 : i32
    return %2, %c0_i32 : i32, i32
  }
  func.func @transform_2(%arg0: i32, %arg1: i32) -> (i32, i32, i32) {
    %c0_i32 = arith.constant 0 : i32
    %c0_i32_0 = arith.constant 0 : i32
    %c0_i32_1 = arith.constant 0 : i32
    return %arg0, %c0_i32, %c0_i32_0 : i32, i32, i32
  }
}

</mosaic_0001>

<llo_original>
// kernel: tpu_custom_call.1
$region0: #{tpu_custom_call.1}
  #allocation0 [shape = 'u32[]', space=smem, size = 0x4, offset = 0x4, fixed_abs, tag = 'smem constant byte address 0x4 - core index']
  #allocation1 [shape = 'u32[144,128]{1,0:T(1,128)}', space=vmem, size = 0x12000, scoped, tag = 'internal scratch']
  %s0 = inlined_call_operand.vmem [shape: f32[20,16], index: 0, kind: input, shape index: {}]
  %s1 = inlined_call_operand.vmem [shape: s32[20,1], index: 1, kind: input, shape index: {}]
  %s2 = inlined_call_operand.hbm [shape: f32[2,8,128], index: 2, kind: output, shape index: {}]
  %s3 = sld [smem:[#allocation0]]
  $region45: #{tpu_custom_call.1} parent=0
    _
  %s5 = ssub.s32 1, %s3
  %s6 = scalar_select 0, %s5, %s3
  $region1: #{tpu_custom_call.1} parent=0
    #allocation2 [shape = 'u8[8192]{0}', space=vmem, size = 0x2000, scoped, tag = 'output window, operand 0']
    #allocation3 [shape = 's32[2]{0}', space=sflag, size = 0x8, scoped, tag = 'scoped memory for tpu_custom_call.1']
    %7 = vsyncpa [#allocation3], 0
    %s8 = scalar_lea.sflag [#allocation3], 1
    %9 = vsyncpa %s8, 0
    loop: start=0, step=1, limit=6
    $region2: #{tpu_custom_call.1} parent=1 // loop_pre_header
      _
    $region3: #{tpu_custom_call.1} parent=1 // loop_header
      %s11 = sphi 0, %s15
      %p12 = scmp.ge.s32.totalorder %s11, 6
      %s18 = sphi 0, %s30
      %s19 = sphi 0, %s26
      %s20 = sphi 0, %s18
      %s21 = sphi 0, %s19
      %s22 = sphi 0, %s20
      %s23 = sphi 0, %s21
      %s41 = sphi 0, %s43
      %s44 = sphi 0, %s41
      %s45 = sphi 0, %s44
      %s61 = sphi 0, %s45
      %s75 = sphi 0, %s77
      %s78 = sphi 0, %s75
      %s79 = sphi 0, %s78
      %s95 = sphi 0, %s79
      %s101 = sphi 0, %s103
      %s104 = sphi 0, %s101
      %s105 = sphi 0, %s104
      %s121 = sphi 0, %s105
    $region4: #{tpu_custom_call.1} parent=1 // loop_header_branch
      %14 = sbr.rel (%p12) target = $region8
    $region5: #{tpu_custom_call.1} parent=1 // loop_body
      %s16 = ssub.s32 %s11, 1
      %s17 = ssub.s32 %s11, 2
      %s24 = sadd.s32 1, %s19
      %p25 = scmp.ge.s32.totalorder %s24, 2
      %s26 = scalar_select %p25, 0, %s24
      %s27 = sadd.s32 1, %s18
      %s28 = scalar_select %p25, %s27, %s18
      %p29 = scmp.ge.s32.totalorder %s28, 2
      %s30 = scalar_select %p29, 0, %s28
      %s31 = smul.u32 %s18, 2
      %s32 = sadd.s32 %s31, %s19
      %p33 = scmp.lt.s32.totalorder %s32, 2
      %s34 = scalar_select %p33, %s32, 2
      %s35 = smul.u32 %s30, 2
      %s36 = sadd.s32 %s35, %s26
      %p37 = scmp.lt.s32.totalorder %s36, 2
      %s38 = scalar_select %p37, %s36, 2
      %s39 = ssub.s32 %s34, %s38
      %p40 = scmp.eq.s32.totalorder %s39, 0
      %s42 = sadd.s32 %s41, 1
      %s43 = scalar_select %p40, %s41, %s42
      %p46 = pneg %p40
      %p47 = scmp.eq.s32.totalorder %s11, 3
      %p48 = por %p46, %p47
      %p49 = scmp.ne.s32.totalorder %s41, %s44
      %p50 = scmp.eq.s32.totalorder %s11, 0
      %p51 = por %p49, %p50
      %p52 = scmp.ne.s32.totalorder %s41, %s44
      %p53 = scmp.eq.s32.totalorder %s16, 3
      %p54 = por %p52, %p53
      %p55 = scmp.ne.s32.totalorder %s44, %s45
      %p56 = scmp.eq.s32.totalorder %s16, 0
      %p57 = por %p55, %p56
      %p58 = scmp.ne.s32.totalorder %s44, %s45
      %p59 = scmp.eq.s32.totalorder %s17, 3
      %p60 = por %p58, %p59
      %p62 = scmp.ne.s32.totalorder %s45, %s61
      %p63 = scmp.eq.s32.totalorder %s17, 0
      %p64 = por %p62, %p63
      %s65 = smul.u32 %s18, 2
      %s66 = sadd.s32 %s65, %s19
      %p67 = scmp.lt.s32.totalorder %s66, 2
      %s68 = scalar_select %p67, %s66, 2
      %s69 = smul.u32 %s30, 2
      %s70 = sadd.s32 %s69, %s26
      %p71 = scmp.lt.s32.totalorder %s70, 2
      %s72 = scalar_select %p71, %s70, 2
      %s73 = ssub.s32 %s68, %s72
      %p74 = scmp.eq.s32.totalorder %s73, 0
      %s76 = sadd.s32 %s75, 1
      %s77 = scalar_select %p74, %s75, %s76
      %p80 = pneg %p74
      %p81 = scmp.eq.s32.totalorder %s11, 3
      %p82 = por %p80, %p81
      %p83 = scmp.ne.s32.totalorder %s75, %s78
      %p84 = scmp.eq.s32.totalorder %s11, 0
      %p85 = por %p83, %p84
      %p86 = scmp.ne.s32.totalorder %s75, %s78
      %p87 = scmp.eq.s32.totalorder %s16, 3
      %p88 = por %p86, %p87
      %p89 = scmp.ne.s32.totalorder %s78, %s79
      %p90 = scmp.eq.s32.totalorder %s16, 0
      %p91 = por %p89, %p90
      %p92 = scmp.ne.s32.totalorder %s78, %s79
      %p93 = scmp.eq.s32.totalorder %s17, 3
      %p94 = por %p92, %p93
      %p96 = scmp.ne.s32.totalorder %s79, %s95
      %p97 = scmp.eq.s32.totalorder %s17, 0
      %p98 = por %p96, %p97
      %s99 = ssub.s32 %s18, %s30
      %p100 = scmp.eq.s32.totalorder %s99, 0
      %s102 = sadd.s32 %s101, 1
      %s103 = scalar_select %p100, %s101, %s102
      %p106 = pneg %p100
      %p107 = scmp.eq.s32.totalorder %s11, 3
      %p108 = por %p106, %p107
      %p109 = scmp.ne.s32.totalorder %s101, %s104
      %p110 = scmp.eq.s32.totalorder %s11, 0
      %p111 = por %p109, %p110
      %p112 = scmp.ne.s32.totalorder %s101, %s104
      %p113 = scmp.eq.s32.totalorder %s16, 3
      %p114 = por %p112, %p113
      %p115 = scmp.ne.s32.totalorder %s104, %s105
      %p116 = scmp.eq.s32.totalorder %s16, 0
      %p117 = por %p115, %p116
      %p118 = scmp.ne.s32.totalorder %s104, %s105
      %p119 = scmp.eq.s32.totalorder %s17, 3
      %p120 = por %p118, %p119
      %p122 = scmp.ne.s32.totalorder %s105, %s121
      %p123 = scmp.eq.s32.totalorder %s17, 0
      %p124 = por %p122, %p123
      %p125 = scmp.le.s32.totalorder 1, %s11
      %p126 = scmp.lt.s32.totalorder %s11, 5
      %p127 = pnand %p125, %p126
      %p128 = pneg %p127
      // Predicated region
      $region9: #{tpu_custom_call.1} parent=5 // pred_check
        _
      $region10: #{tpu_custom_call.1} parent=5 // pred_check_branch
        %130 = sbr.rel (%p127) target = $region12
      $region11: #{tpu_custom_call.1} parent=5 // pred_region
        %s131 = ssub.s32 %s11, 1
      $region12: #{tpu_custom_call.1} parent=5 // pred_fallthru
        _
      %p132 = scmp.lt.s32.totalorder %s11, 4
      // Predicated region
      $region13: #{tpu_custom_call.1} parent=5 // pred_check
        %p133 = pneg %p132
      $region14: #{tpu_custom_call.1} parent=5 // pred_check_branch
        %135 = sbr.rel (%p133) target = $region16
      $region15: #{tpu_custom_call.1} parent=5 // pred_region
        // Predicated region
        $region17: #{tpu_custom_call.1} parent=15 // pred_check
          %p136 = pneg %p51
        $region18: #{tpu_custom_call.1} parent=15 // pred_check_branch
          %138 = sbr.rel (%p136) target = $region20
        $region19: #{tpu_custom_call.1} parent=15 // pred_region
          %s139 = smul.u32 %s18, 2
          %s140 = sadd.s32 %s139, %s19
          %p141 = scmp.lt.s32.totalorder %s140, 2
          %s142 = scalar_select %p141, %s140, 2
          %p143 = scmp.lt.s32.totalorder %s142, 2
          %s144 = scalar_select %p143, %s142, 2
          %s145 = smul.addr %s144, 8
          %s146 = scalar_lea.vmem %s0, %s145
          %s147 = smul.u32 %s18, 2
          %s148 = sadd.s32 %s147, %s19
          %p149 = scmp.lt.s32.totalorder %s148, 2
          %s150 = scalar_select %p149, %s148, 2
        $region20: #{tpu_custom_call.1} parent=15 // pred_fallthru
          _
        // Predicated region
        $region21: #{tpu_custom_call.1} parent=15 // pred_check
          %p151 = pneg %p85
        $region22: #{tpu_custom_call.1} parent=15 // pred_check_branch
          %153 = sbr.rel (%p151) target = $region24
        $region23: #{tpu_custom_call.1} parent=15 // pred_region
          %s154 = smul.u32 %s18, 2
          %s155 = sadd.s32 %s154, %s19
          %p156 = scmp.lt.s32.totalorder %s155, 2
          %s157 = scalar_select %p156, %s155, 2
          %p158 = scmp.lt.s32.totalorder %s157, 2
          %s159 = scalar_select %p158, %s157, 2
          %s160 = smul.addr %s159, 8
          %s161 = scalar_lea.vmem %s1, %s160
          %s162 = smul.u32 %s18, 2
          %s163 = sadd.s32 %s162, %s19
          %p164 = scmp.lt.s32.totalorder %s163, 2
          %s165 = scalar_select %p164, %s163, 2
        $region24: #{tpu_custom_call.1} parent=15 // pred_fallthru
          _
      $region16: #{tpu_custom_call.1} parent=5 // pred_fallthru
        _
      %p166 = scmp.le.s32.totalorder 1, %s11
      %p167 = scmp.lt.s32.totalorder %s11, 5
      %p168 = pnand %p166, %p167
      %p169 = pneg %p168
      // Predicated region
      $region25: #{tpu_custom_call.1} parent=5 // pred_check
        _
      $region26: #{tpu_custom_call.1} parent=5 // pred_check_branch
        %171 = sbr.rel (%p168) target = $region28
      $region27: #{tpu_custom_call.1} parent=5 // pred_region
        %s172 = ssub.s32 %s11, 1
        %s173 = smul.u32 %s20, 2
        %s174 = sadd.s32 %s173, %s21
        %p175 = scmp.lt.s32.totalorder %s174, 2
        %s176 = scalar_select %p175, %s174, 2
        %p177 = scmp.lt.s32.totalorder %s176, 2
        %s178 = scalar_select %p177, %s176, 2
        %s179 = smul.addr %s178, 8
        %s180 = scalar_lea.vmem %s0, %s179
        %p181 = pneg %p57
        %p182 = pneg %p54
        %s183 = smul.u32 %s20, 2
        %s184 = sadd.s32 %s183, %s21
        %p185 = scmp.lt.s32.totalorder %s184, 2
        %s186 = scalar_select %p185, %s184, 2
        %p187 = scmp.lt.s32.totalorder %s186, 2
        %s188 = scalar_select %p187, %s186, 2
        %s189 = smul.addr %s188, 8
        %s190 = scalar_lea.vmem %s1, %s189
        %p191 = pneg %p91
        %p192 = pneg %p88
        %p193 = pneg %p117
        %p194 = pneg %p114
        %s195 = sand.u32 %s104, 1
        %s196 = scalar_lea.sflag [#allocation3], %s195
        %s197 = sand.u32 %s104, 1
        %s198 = smul.addr %s197, 8
        %s199 = scalar_lea.vmem [#allocation2], %s198
        %s200 = smul.u32 %s20, 2
        %s201 = sadd.s32 %s200, %s21
        %p202 = scmp.lt.s32.totalorder %s201, 2
        %s203 = scalar_select %p202, %s201, 2
        %p204 = scmp.lt.s32.totalorder %s203, 2
        %s205 = scalar_select %p204, %s203, 2
        %s206 = smul.addr %s205, 8
        %s207 = scalar_lea.vmem %s0, %s206
        %s208 = smul.u32 %s20, 2
        %s209 = sadd.s32 %s208, %s21
        %p210 = scmp.lt.s32.totalorder %s209, 2
        %s211 = scalar_select %p210, %s209, 2
        %s212 = smul.u32 %s20, 2
        %s213 = sadd.s32 %s212, %s21
        %p214 = scmp.lt.s32.totalorder %s213, 2
        %s215 = scalar_select %p214, %s213, 2
        %p216 = scmp.lt.s32.totalorder %s215, 2
        %s217 = scalar_select %p216, %s215, 2
        %s218 = smul.addr %s217, 8
        %s219 = scalar_lea.vmem %s1, %s218
        %s220 = smul.u32 %s20, 2
        %s221 = sadd.s32 %s220, %s21
        %p222 = scmp.lt.s32.totalorder %s221, 2
        %s223 = scalar_select %p222, %s221, 2
        %v224 = vld [vmem:[%s207] sm:$0xff]
        %v225 = vld [vmem:[%s219] sm:$0xff]
        %vm226 = vcmask 130048
        %v227 = vsel %vm226, %v224, -inf
        %228 = vmax.xlane.f32.xlu0 %v227
        %v229 = vpop.xlane.xlu0 %228
        %v230 = vsub.f32 %v224, %v229
        %v231 = vmul.f32 %v230, 1.442695
        %v232 = vpow.pop %v231
        %v233 = vsel %vm226, %v232, 0.0
        %234 = vadd.xlane.f32.xlu0 %v233
        %v235 = vpop.xlane.xlu0 %234
        %v236 = vlaneseq
        %v237 = vand.u32 %v236, 127
        %238 = vset.pattern.permute.xlu0 0
        %239 = vperm.xlu0 %238, %v225
        %v240 = vpop.permute.xlu0 %239
        %vm241 = vcmp.eq.s32.totalorder %v237, %v240
        %v242 = vsel %vm241, %v232, 0.0
        %v243 = vsel %vm226, %v242, 0.0
        %244 = vadd.xlane.f32.xlu0 %v243
        %v245 = vpop.xlane.xlu0 %244
        %v246 = vrcp.pop %v235
        %v247 = vmul.f32 %v245, %v246
        %v248 = vsub.f32 1.0, %v247
        %v249 = vmul.f32 %v248, %v248
        %v250 = vadd.f32 %v247, 1e-08
        %v251 = vlog2.pop %v250
        %v252 = vmul.f32 %v251, 0.6931472
        %v253 = vsub.f32 0.0, %v252
        %v254 = vmul.f32 %v249, 11.5
        %v255 = vmul.f32 %v254, %v253
        %s256 = smul.u32 %s20, 2
        %s257 = sadd.s32 %s256, %s21
        %s258 = smul.u32 %s257, 8
        %v259 = vlaneseq
        %v260 = vshrl.u32 %v259, 7
        %v261 = vstv %s258
        %v262 = vadd.s32 %v261, %v260
        %vm263 = vcmp.lt.s32.totalorder %v262, 20
        %v264 = vsel %vm263, %v255, 0.0
        %p265 = scmp.eq.s32.totalorder %s21, 0
        // Predicated region
        $region29: #{tpu_custom_call.1} parent=27 // pred_check
          %p266 = pneg %p265
        $region30: #{tpu_custom_call.1} parent=27 // pred_check_branch
          %268 = sbr.rel (%p266) target = $region32
        $region31: #{tpu_custom_call.1} parent=27 // pred_region
          %269 = vst [vmem:[%s199] sm:$0xff] 0.0
        $region32: #{tpu_custom_call.1} parent=27 // pred_fallthru
          _
        %v270 = vld [vmem:[%s199] sm:$0xff]
        %vm271 = vcmask 7168
        %v272 = vsel %vm271, %v264, 0.0
        %273 = vadd.xlane.f32.xlu0 %v272
        %v274 = vpop.xlane.xlu0 %273
        %v275 = vrot.slane %v274, 4
        %v276 = vadd.f32 %v274, %v275
        %v277 = vrot.slane %v276, 2
        %v278 = vadd.f32 %v276, %v277
        %v279 = vrot.slane %v278, 1
        %v280 = vadd.f32 %v278, %v279
        %s281 = vtos %v280
        %v282 = vstv %s281
        %v283 = vadd.f32 %v270, %v282
        %284 = vst [vmem:[%s199] sm:$0xff] %v283
        %s285 = sand.u32 %s104, 1
        %s286 = scalar_lea.sflag [#allocation3], %s285
        %s287 = sand.u32 %s104, 1
        %s288 = smul.addr %s287, 8
        %s289 = scalar_lea.vmem [#allocation2], %s288
        // Predicated region
        $region33: #{tpu_custom_call.1} parent=27 // pred_check
          %p290 = pneg %p114
        $region34: #{tpu_custom_call.1} parent=27 // pred_check_branch
          %292 = sbr.rel (%p290) target = $region36
        $region35: #{tpu_custom_call.1} parent=27 // pred_region
          %s294 = ssub.s32 128, 128
          %295 = vsyncadd %s286, %s294
          %s296 = smul.addr %s20, 128
          %s297 = scalar_lea.hbm %s2, %s296
          %s299 = sshll.u32 %s289, 4
          %s300 = int_to_ptr.vmem [resolvable:$true] %s299
          %302 = dma.vmem_to_hbm [thread:$0]  %s300, 128, %s297, %s286
        $region36: #{tpu_custom_call.1} parent=27 // pred_fallthru
          _
      $region28: #{tpu_custom_call.1} parent=5 // pred_fallthru
        _
      %p303 = scmp.le.s32.totalorder 2, %s11
      // Predicated region
      $region37: #{tpu_custom_call.1} parent=5 // pred_check
        %p304 = pneg %p303
      $region38: #{tpu_custom_call.1} parent=5 // pred_check_branch
        %306 = sbr.rel (%p304) target = $region40
      $region39: #{tpu_custom_call.1} parent=5 // pred_region
        %s307 = ssub.s32 %s11, 2
        // Predicated region
        $region41: #{tpu_custom_call.1} parent=39 // pred_check
          %p308 = pneg %p120
        $region42: #{tpu_custom_call.1} parent=39 // pred_check_branch
          %310 = sbr.rel (%p308) target = $region44
        $region43: #{tpu_custom_call.1} parent=39 // pred_region
          %s311 = sand.u32 %s105, 1
          %s312 = scalar_lea.sflag [#allocation3], %s311
          %s313 = sand.u32 %s105, 1
          %s314 = smul.addr %s313, 8
          %s315 = scalar_lea.vmem [#allocation2], %s314
          %316 = dma.done %s312, 128
        $region44: #{tpu_custom_call.1} parent=39 // pred_fallthru
          _
      $region40: #{tpu_custom_call.1} parent=5 // pred_fallthru
        _
    $region6: #{tpu_custom_call.1} parent=1 // loop_footer
      %s15 = sadd.s32 1, %s11
    $region7: #{tpu_custom_call.1} parent=1 // loop_footer_branch
      %10 = sbr.rel target = $region3
    $region8: #{tpu_custom_call.1} parent=1 // loop_exit
      _
    %317 = vsyncpa [#allocation3], 1
    %s318 = scalar_lea.sflag [#allocation3], 1
    %319 = vsyncpa %s318, 1

</llo_original>
